<compile_context>
chip_gen: v5e
topology: v5e:2x2
jax: 0.10.0
libtpu: 0.0.40
codegen_flags: <defaults>
</compile_context>

<pallas_src>
import jax
import jax.numpy as jnp
from jax.experimental import pallas as pl
from jax.experimental.pallas import tpu as pltpu

D = 64          # input_shape (must be 64: s_dense1 is re-applied to a 64-dim tensor)
B = 8           # rows of xt / xt1
BU = 8          # rows of ut (cat along dim 0 forces ut feature dim == 64)
W2 = 2 * D      # 128: lane-packed width ([xt | xt1] / block-diagonal weights)
NOUT = 128      # lane-dense head width: [pxt1 (64) | put_xt (1) | put_xt1 (1) | pad]
ROWS = B + BU   # 16 rows in the packed activation / output


def siam_kernel(act_ref, w_ref, b_ref, out_ref):
    """act_ref: (16, 128)  rows 0:8 = [xt | xt1],  rows 8:16 = [ut | 0]
       w_ref:   (4, 128, 128)  [s_dense1_bd, s_dense2_bd, s_dense3_bd, head]
       b_ref:   (4, 1, 128)
       out_ref: (16, 128)  rows 0:8 = lat @ Wh + bh, rows 8:16 = [ut | 0] @ Wh + bh
    """
    x = act_ref[0:B, :]          # (8, 128) lane-packed sister inputs
    utp = act_ref[B:ROWS, :]     # (8, 128) zero-padded ut

    def lin(v, k):
        return jnp.dot(v, w_ref[k], preferred_element_type=jnp.float32) + b_ref[k]

    # Both sister passes at once on full 128-lane vregs (block-diagonal weights).
    h = jax.nn.relu(lin(x, 0))
    h = jax.nn.relu(lin(h, 1))
    h = jax.nn.relu(lin(h, 2))
    # PyTorch source re-uses s_dense1 here (s_out is defined but unused).
    lat = jax.nn.sigmoid(lin(h, 0))          # (8, 128) = [lat_xt | lat_xt1]

    # Fused prediction heads: two aligned 8-row matmuls, two unmasked 128-wide stores.
    out_ref[0:B, :] = lin(lat, 3)
    out_ref[B:ROWS, :] = lin(utp, 3)


def siam_forward(xt, xt1, ut, packed):
    wstack, bstack = packed
    # Wrapper-side layout plumbing only: lane-pack sisters, zero-pad ut, stack rows.
    act = jnp.concatenate(
        [jnp.concatenate([xt, xt1], axis=1),
         jnp.concatenate([ut, jnp.zeros_like(ut)], axis=1)],
        axis=0)                                              # (16, 128)

    y = pl.pallas_call(
        siam_kernel,
        in_specs=[pl.BlockSpec(memory_space=pltpu.MemorySpace.VMEM),
                  pl.BlockSpec(memory_space=pltpu.MemorySpace.VMEM),
                  pl.BlockSpec(memory_space=pltpu.MemorySpace.VMEM)],
        out_specs=pl.BlockSpec(memory_space=pltpu.MemorySpace.VMEM),
        out_shape=jax.ShapeDtypeStruct((ROWS, NOUT), jnp.float32),
    )(act, wstack, bstack)

    # Layout plumbing (one tiny fused XLA gather):
    #   pxt1 = y[:, 0:64]  (rows 0:8 from lat_xt, rows 8:16 from ut)
    #   put  = [y[0:8, 64] ; y[0:8, 65]]  (from lat_xt / lat_xt1)
    pxt1_flat = y[:, 0:D].reshape(-1)
    put_flat = jnp.concatenate([y[0:B, D], y[0:B, D + 1]])
    return jnp.concatenate([pxt1_flat, put_flat])


def init_params(key):
    ks = jax.random.split(key, 10)

    def lin(kw, kb, fan_in, fan_out):
        bound = 1.0 / (fan_in ** 0.5)
        w = jax.random.uniform(kw, (fan_in, fan_out), jnp.float32, -bound, bound)
        b = jax.random.uniform(kb, (1, fan_out), jnp.float32, -bound, bound)
        return w, b

    w1, b1 = lin(ks[0], ks[1], D, D)       # s_dense1
    w2, b2 = lin(ks[2], ks[3], D, D)       # s_dense2
    w3, b3 = lin(ks[4], ks[5], D, D)       # s_dense3
    # s_out is declared in __init__ but never used in forward -> not materialized.
    wp, bp = lin(ks[6], ks[7], D, D)       # pred_xt1
    wu, bu = lin(ks[8], ks[9], D, 1)       # pred_ut
    return (w1, b1, w2, b2, w3, b3, wp, bp, wu, bu)


def pack_params(params):
    """One-time offline packing:
       * block-diagonal diag(W, W) (128, 128) sister weights + duplicated biases
         so both sister passes run lane-packed;
       * one (128, 128) head weight: cols 0:64 -> pred_xt1, col 64 -> pred_ut from
         lat_xt, col 65 -> pred_ut from lat_xt1, rest zero-padded;
       * everything stacked into one weight array and one bias array."""
    w1, b1, w2, b2, w3, b3, wp, bp, wu, bu = params
    z = jnp.zeros((D, D), jnp.float32)

    def bd(w):   # (64, 64) -> block-diagonal (128, 128)
        return jnp.block([[w, z], [z, w]])

    def dup(b):  # (1, 64) -> (1, 128)
        return jnp.concatenate([b, b], axis=1)

    wh = jnp.zeros((W2, NOUT), jnp.float32)
    wh = wh.at[0:D, 0:D].set(wp)
    wh = wh.at[0:D, D].set(wu[:, 0])
    wh = wh.at[D:W2, D + 1].set(wu[:, 0])
    bh = jnp.zeros((1, NOUT), jnp.float32)
    bh = bh.at[:, 0:D].set(bp)
    bh = bh.at[:, D].set(bu[0, 0])
    bh = bh.at[:, D + 1].set(bu[0, 0])

    wstack = jnp.stack([bd(w1), bd(w2), bd(w3), wh])      # (4, 128, 128)
    bstack = jnp.stack([dup(b1), dup(b2), dup(b3), bh])   # (4, 1, 128)
    return wstack, bstack


def ref_forward(xt, xt1, ut, params):
    w1, b1, w2, b2, w3, b3, wp, bp, wu, bu = params

    def sister(x):
        h = jax.nn.relu(x @ w1 + b1)
        h = jax.nn.relu(h @ w2 + b2)
        h = jax.nn.relu(h @ w3 + b3)
        return jax.nn.sigmoid(h @ w1 + b1)

    lx, lx1 = sister(xt), sister(xt1)
    pxt1 = jnp.concatenate([lx, ut], axis=0) @ wp + bp
    put = jnp.concatenate([lx, lx1], axis=0) @ wu + bu
    return jnp.concatenate([pxt1.reshape(-1), put.reshape(-1)])


if __name__ == "__main__":
    key = jax.random.PRNGKey(0)
    k_xt, k_xt1, k_ut, k_p = jax.random.split(key, 4)

    xt = jax.random.normal(k_xt, (B, D), jnp.float32)
    xt1 = jax.random.normal(k_xt1, (B, D), jnp.float32)
    ut = jax.random.normal(k_ut, (BU, D), jnp.float32)
    params = init_params(k_p)
    packed = pack_params(params)   # built once, outside the jitted forward

    out = jax.jit(siam_forward)(xt, xt1, ut, packed)
    out = jax.block_until_ready(out)

    ref = ref_forward(xt, xt1, ut, params)
    assert out.shape == ((B + BU) * D + 2 * B,)
    assert jnp.allclose(out, ref, atol=1e-5, rtol=1e-5), "mismatch vs JAX reference"

    print("KERNEL_OK")
</pallas_src>

<mosaic_0001>
module attributes {stable_mosaic.version = 11 : i64} {
  func.func @siam_kernel(%arg0: memref<16x128xf32, #tpu.memory_space<vmem>>, %arg1: memref<4x128x128xf32, #tpu.memory_space<vmem>>, %arg2: memref<4x1x128xf32, #tpu.memory_space<vmem>>, %arg3: memref<16x128xf32, #tpu.memory_space<vmem>>) attributes {dimension_semantics = [], scalar_prefetch = 0 : i64, scratch_operands = 0 : i64, tpu.core_type = #tpu.core_type<tc>} {
    %c0 = arith.constant 0 : index
    %c0_0 = arith.constant 0 : index
    %0 = vector.load %arg0[%c0, %c0_0] : memref<16x128xf32, #tpu.memory_space<vmem>>, vector<8x128xf32>
    %c8 = arith.constant 8 : index
    %c0_1 = arith.constant 0 : index
    %1 = vector.load %arg0[%c8, %c0_1] : memref<16x128xf32, #tpu.memory_space<vmem>>, vector<8x128xf32>
    %c0_2 = arith.constant 0 : index
    %c0_3 = arith.constant 0 : index
    %c0_4 = arith.constant 0 : index
    %2 = vector.load %arg1[%c0_2, %c0_3, %c0_4] : memref<4x128x128xf32, #tpu.memory_space<vmem>>, vector<1x128x128xf32>
    %3 = vector.shape_cast %2 : vector<1x128x128xf32> to vector<128x128xf32>
    %cst = arith.constant dense<0.000000e+00> : vector<8x128xf32>
    %4 = tpu.matmul %0, %3, %cst {dimension_numbers = #tpu.dot_dimension_numbers<[1], [0], [0], [1], [0, 0, 1, 1], [], []>} : vector<8x128xf32>, vector<128x128xf32>, vector<8x128xf32> -> vector<8x128xf32>
    %c0_5 = arith.constant 0 : index
    %c0_6 = arith.constant 0 : index
    %c0_7 = arith.constant 0 : index
    %5 = vector.load %arg2[%c0_5, %c0_6, %c0_7] : memref<4x1x128xf32, #tpu.memory_space<vmem>>, vector<1x1x128xf32>
    %6 = vector.shape_cast %5 : vector<1x1x128xf32> to vector<1x128xf32>
    %7 = vector.broadcast %6 : vector<1x128xf32> to vector<8x128xf32>
    %8 = arith.addf %4, %7 : vector<8x128xf32>
    %cst_8 = arith.constant 0.000000e+00 : f32
    %9 = vector.broadcast %cst_8 : f32 to vector<8x128xf32>
    %10 = arith.maximumf %8, %9 : vector<8x128xf32>
    %c1 = arith.constant 1 : index
    %c0_9 = arith.constant 0 : index
    %c0_10 = arith.constant 0 : index
    %11 = vector.load %arg1[%c1, %c0_9, %c0_10] : memref<4x128x128xf32, #tpu.memory_space<vmem>>, vector<1x128x128xf32>
    %12 = vector.shape_cast %11 : vector<1x128x128xf32> to vector<128x128xf32>
    %cst_11 = arith.constant dense<0.000000e+00> : vector<8x128xf32>
    %13 = tpu.matmul %10, %12, %cst_11 {dimension_numbers = #tpu.dot_dimension_numbers<[1], [0], [0], [1], [0, 0, 1, 1], [], []>} : vector<8x128xf32>, vector<128x128xf32>, vector<8x128xf32> -> vector<8x128xf32>
    %c1_12 = arith.constant 1 : index
    %c0_13 = arith.constant 0 : index
    %c0_14 = arith.constant 0 : index
    %14 = vector.load %arg2[%c1_12, %c0_13, %c0_14] : memref<4x1x128xf32, #tpu.memory_space<vmem>>, vector<1x1x128xf32>
    %15 = vector.shape_cast %14 : vector<1x1x128xf32> to vector<1x128xf32>
    %16 = vector.broadcast %15 : vector<1x128xf32> to vector<8x128xf32>
    %17 = arith.addf %13, %16 : vector<8x128xf32>
    %cst_15 = arith.constant 0.000000e+00 : f32
    %18 = vector.broadcast %cst_15 : f32 to vector<8x128xf32>
    %19 = arith.maximumf %17, %18 : vector<8x128xf32>
    %c2 = arith.constant 2 : index
    %c0_16 = arith.constant 0 : index
    %c0_17 = arith.constant 0 : index
    %20 = vector.load %arg1[%c2, %c0_16, %c0_17] : memref<4x128x128xf32, #tpu.memory_space<vmem>>, vector<1x128x128xf32>
    %21 = vector.shape_cast %20 : vector<1x128x128xf32> to vector<128x128xf32>
    %cst_18 = arith.constant dense<0.000000e+00> : vector<8x128xf32>
    %22 = tpu.matmul %19, %21, %cst_18 {dimension_numbers = #tpu.dot_dimension_numbers<[1], [0], [0], [1], [0, 0, 1, 1], [], []>} : vector<8x128xf32>, vector<128x128xf32>, vector<8x128xf32> -> vector<8x128xf32>
    %c2_19 = arith.constant 2 : index
    %c0_20 = arith.constant 0 : index
    %c0_21 = arith.constant 0 : index
    %23 = vector.load %arg2[%c2_19, %c0_20, %c0_21] : memref<4x1x128xf32, #tpu.memory_space<vmem>>, vector<1x1x128xf32>
    %24 = vector.shape_cast %23 : vector<1x1x128xf32> to vector<1x128xf32>
    %25 = vector.broadcast %24 : vector<1x128xf32> to vector<8x128xf32>
    %26 = arith.addf %22, %25 : vector<8x128xf32>
    %cst_22 = arith.constant 0.000000e+00 : f32
    %27 = vector.broadcast %cst_22 : f32 to vector<8x128xf32>
    %28 = arith.maximumf %26, %27 : vector<8x128xf32>
    %c0_23 = arith.constant 0 : index
    %c0_24 = arith.constant 0 : index
    %c0_25 = arith.constant 0 : index
    %29 = vector.load %arg1[%c0_23, %c0_24, %c0_25] : memref<4x128x128xf32, #tpu.memory_space<vmem>>, vector<1x128x128xf32>
    %30 = vector.shape_cast %29 : vector<1x128x128xf32> to vector<128x128xf32>
    %cst_26 = arith.constant dense<0.000000e+00> : vector<8x128xf32>
    %31 = tpu.matmul %28, %30, %cst_26 {dimension_numbers = #tpu.dot_dimension_numbers<[1], [0], [0], [1], [0, 0, 1, 1], [], []>} : vector<8x128xf32>, vector<128x128xf32>, vector<8x128xf32> -> vector<8x128xf32>
    %c0_27 = arith.constant 0 : index
    %c0_28 = arith.constant 0 : index
    %c0_29 = arith.constant 0 : index
    %32 = vector.load %arg2[%c0_27, %c0_28, %c0_29] : memref<4x1x128xf32, #tpu.memory_space<vmem>>, vector<1x1x128xf32>
    %33 = vector.shape_cast %32 : vector<1x1x128xf32> to vector<1x128xf32>
    %34 = vector.broadcast %33 : vector<1x128xf32> to vector<8x128xf32>
    %35 = arith.addf %31, %34 : vector<8x128xf32>
    %36 = arith.negf %35 : vector<8x128xf32>
    %37 = math.exp %36 : vector<8x128xf32>
    %cst_30 = arith.constant 1.000000e+00 : f32
    %38 = vector.broadcast %cst_30 : f32 to vector<8x128xf32>
    %39 = arith.addf %38, %37 : vector<8x128xf32>
    %40 = arith.divf %38, %39 : vector<8x128xf32>
    %c3 = arith.constant 3 : index
    %c0_31 = arith.constant 0 : index
    %c0_32 = arith.constant 0 : index
    %41 = vector.load %arg1[%c3, %c0_31, %c0_32] : memref<4x128x128xf32, #tpu.memory_space<vmem>>, vector<1x128x128xf32>
    %42 = vector.shape_cast %41 : vector<1x128x128xf32> to vector<128x128xf32>
    %cst_33 = arith.constant dense<0.000000e+00> : vector<8x128xf32>
    %43 = tpu.matmul %40, %42, %cst_33 {dimension_numbers = #tpu.dot_dimension_numbers<[1], [0], [0], [1], [0, 0, 1, 1], [], []>} : vector<8x128xf32>, vector<128x128xf32>, vector<8x128xf32> -> vector<8x128xf32>
    %c3_34 = arith.constant 3 : index
    %c0_35 = arith.constant 0 : index
    %c0_36 = arith.constant 0 : index
    %44 = vector.load %arg2[%c3_34, %c0_35, %c0_36] : memref<4x1x128xf32, #tpu.memory_space<vmem>>, vector<1x1x128xf32>
    %45 = vector.shape_cast %44 : vector<1x1x128xf32> to vector<1x128xf32>
    %46 = vector.broadcast %45 : vector<1x128xf32> to vector<8x128xf32>
    %47 = arith.addf %43, %46 : vector<8x128xf32>
    %c0_37 = arith.constant 0 : index
    %c0_38 = arith.constant 0 : index
    %48 = vector.load %arg3[%c0_37, %c0_38] : memref<16x128xf32, #tpu.memory_space<vmem>>, vector<8x128xf32>
    tpu.vector_store %arg3[%c0_37, %c0_38], %47 {strides = array<i32>} : memref<16x128xf32, #tpu.memory_space<vmem>>, vector<8x128xf32>,
    %c3_39 = arith.constant 3 : index
    %c0_40 = arith.constant 0 : index
    %c0_41 = arith.constant 0 : index
    %49 = vector.load %arg1[%c3_39, %c0_40, %c0_41] : memref<4x128x128xf32, #tpu.memory_space<vmem>>, vector<1x128x128xf32>
    %50 = vector.shape_cast %49 : vector<1x128x128xf32> to vector<128x128xf32>
    %cst_42 = arith.constant dense<0.000000e+00> : vector<8x128xf32>
    %51 = tpu.matmul %1, %50, %cst_42 {dimension_numbers = #tpu.dot_dimension_numbers<[1], [0], [0], [1], [0, 0, 1, 1], [], []>} : vector<8x128xf32>, vector<128x128xf32>, vector<8x128xf32> -> vector<8x128xf32>
    %c3_43 = arith.constant 3 : index
    %c0_44 = arith.constant 0 : index
    %c0_45 = arith.constant 0 : index
    %52 = vector.load %arg2[%c3_43, %c0_44, %c0_45] : memref<4x1x128xf32, #tpu.memory_space<vmem>>, vector<1x1x128xf32>
    %53 = vector.shape_cast %52 : vector<1x1x128xf32> to vector<1x128xf32>
    %54 = vector.broadcast %53 : vector<1x128xf32> to vector<8x128xf32>
    %55 = arith.addf %51, %54 : vector<8x128xf32>
    %c8_46 = arith.constant 8 : index
    %c0_47 = arith.constant 0 : index
    %56 = vector.load %arg3[%c8_46, %c0_47] : memref<16x128xf32, #tpu.memory_space<vmem>>, vector<8x128xf32>
    tpu.vector_store %arg3[%c8_46, %c0_47], %55 {strides = array<i32>} : memref<16x128xf32, #tpu.memory_space<vmem>>, vector<8x128xf32>,
    return
  }
}

</mosaic_0001>

<llo_original>
// kernel: siam_forward.1
$region0: #{siam_forward.1}
  #allocation0 [shape = 'u32[]', space=smem, size = 0x4, offset = 0x4, fixed_abs, tag = 'smem constant byte address 0x4 - core index']
  #allocation1 [shape = 'u32[72,128]{1,0:T(1,128)}', space=vmem, size = 0x9000, scoped, tag = 'internal scratch']
  %s0 = inlined_call_operand.vmem [shape: f32[16,128], index: 0, kind: input, shape index: {}]
  %s1 = inlined_call_operand.hbm [shape: f32[4,128,128], index: 1, kind: input, shape index: {}]
  %s2 = inlined_call_operand.vmem [shape: f32[4,1,128], index: 2, kind: input, shape index: {}]
  %s3 = inlined_call_operand.vmem [shape: f32[16,128], index: 3, kind: output, shape index: {}]
  %s4 = sld [smem:[#allocation0]]
  $region26: #{siam_forward.1} parent=0
    _
  %s6 = ssub.s32 1, %s4
  %s7 = scalar_select 0, %s6, %s4
  $region1: #{siam_forward.1} parent=0
    #allocation2 [shape = 'u8[262144]{0}', space=vmem, size = 0x40000, scoped, tag = 'input window, operand 1, single buffered']
    #allocation3 [shape = 's32[1]{0}', space=sflag, size = 0x4, scoped, tag = 'scoped memory for siam_forward.1']
    %8 = vsyncpa [#allocation3], 0
    // Predicated region
    $region2: #{siam_forward.1} parent=1 // pred_check
      _
    $region3: #{siam_forward.1} parent=1 // pred_check_branch
      %10 = sbr.rel (0) target = $region5
    $region4: #{siam_forward.1} parent=1 // pred_region
      _
    $region5: #{siam_forward.1} parent=1 // pred_fallthru
      _
    // Predicated region
    $region6: #{siam_forward.1} parent=1 // pred_check
      _
    $region7: #{siam_forward.1} parent=1 // pred_check_branch
      %12 = sbr.rel (0) target = $region9
    $region8: #{siam_forward.1} parent=1 // pred_region
      %14 = vsyncadd [#allocation3], 0
      %s15 = sshll.u32 %s1, 4
      %s16 = int_to_ptr.hbm [resolvable:$true] %s15
      %s17 = sshll.u32 [#allocation2], 4
      %s18 = int_to_ptr.vmem [resolvable:$true] %s17
      %23 = dma.hbm_to_vmem [thread:$0]  %s16, 8192, %s18, [#allocation3], 128, 128, 8
    $region9: #{siam_forward.1} parent=1 // pred_fallthru
      _
    // Predicated region
    $region10: #{siam_forward.1} parent=1 // pred_check
      _
    $region11: #{siam_forward.1} parent=1 // pred_check_branch
      %25 = sbr.rel (0) target = $region13
    $region12: #{siam_forward.1} parent=1 // pred_region
      _
    $region13: #{siam_forward.1} parent=1 // pred_fallthru
      _
    // Predicated region
    $region14: #{siam_forward.1} parent=1 // pred_check
      _
    $region15: #{siam_forward.1} parent=1 // pred_check_branch
      %27 = sbr.rel (0) target = $region17
    $region16: #{siam_forward.1} parent=1 // pred_region
      %29 = dma.done [#allocation3], 8192
    $region17: #{siam_forward.1} parent=1 // pred_fallthru
      _
    %v30 = vld [vmem:[%s0] sm:$0xff]
    %v31 = vld [vmem:[%s0 + $0x8] sm:$0xff]
    %v32 = vld [vmem:[#allocation2] sm:$0xff]
    %v33 = vld [vmem:[#allocation2 + $0x8] sm:$0xff]
    %v34 = vld [vmem:[#allocation2 + $0x10] sm:$0xff]
    %v35 = vld [vmem:[#allocation2 + $0x18] sm:$0xff]
    %v36 = vld [vmem:[#allocation2 + $0x20] sm:$0xff]
    %v37 = vld [vmem:[#allocation2 + $0x28] sm:$0xff]
    %v38 = vld [vmem:[#allocation2 + $0x30] sm:$0xff]
    %v39 = vld [vmem:[#allocation2 + $0x38] sm:$0xff]
    %v40 = vld [vmem:[#allocation2 + $0x40] sm:$0xff]
    %v41 = vld [vmem:[#allocation2 + $0x48] sm:$0xff]
    %v42 = vld [vmem:[#allocation2 + $0x50] sm:$0xff]
    %v43 = vld [vmem:[#allocation2 + $0x58] sm:$0xff]
    %v44 = vld [vmem:[#allocation2 + $0x60] sm:$0xff]
    %v45 = vld [vmem:[#allocation2 + $0x68] sm:$0xff]
    %v46 = vld [vmem:[#allocation2 + $0x70] sm:$0xff]
    %v47 = vld [vmem:[#allocation2 + $0x78] sm:$0xff]
    %v48 = vld [vmem:[%s2] sm:$0x1]
    %v50 = vperm.slane %v48, 0
    %52 = vmatpush.msra.mxu0 %v47
    %53 = vmatpush.msra.mxu0 %v46
    %54 = vmatpush.msra.mxu0 %v45
    %55 = vmatpush.msra.mxu0 %v44
    %56 = vmatpush.msra.mxu0 %v43
    %57 = vmatpush.msra.mxu0 %v42
    %58 = vmatpush.msra.mxu0 %v41
    %59 = vmatpush.msra.mxu0 %v40
    %60 = vmatpush.msra.mxu0 %v39
    %61 = vmatpush.msra.mxu0 %v38
    %62 = vmatpush.msra.mxu0 %v37
    %63 = vmatpush.msra.mxu0 %v36
    %64 = vmatpush.msra.mxu0 %v35
    %65 = vmatpush.msra.mxu0 %v34
    %66 = vmatpush.msra.mxu0 %v33
    %67 = vmatpush.msra.mxu0 %v32
    %68 = vmatmul.f32.gmra.mxu0 %v30
    %v69 = vpop.f32.mrf.mxu0
    %v70 = vadd.f32 %v50, %v69
    %71 = vdwg.mxu0
    %v72 = vmax.f32 %v70, 0.0
    %s73 = scalar_lea.vmem [#allocation2], 128
    %v74 = vld [vmem:[%s73] sm:$0xff]
    %v75 = vld [vmem:[%s73 + $0x8] sm:$0xff]
    %v76 = vld [vmem:[%s73 + $0x10] sm:$0xff]
    %v77 = vld [vmem:[%s73 + $0x18] sm:$0xff]
    %v78 = vld [vmem:[%s73 + $0x20] sm:$0xff]
    %v79 = vld [vmem:[%s73 + $0x28] sm:$0xff]
    %v80 = vld [vmem:[%s73 + $0x30] sm:$0xff]
    %v81 = vld [vmem:[%s73 + $0x38] sm:$0xff]
    %v82 = vld [vmem:[%s73 + $0x40] sm:$0xff]
    %v83 = vld [vmem:[%s73 + $0x48] sm:$0xff]
    %v84 = vld [vmem:[%s73 + $0x50] sm:$0xff]
    %v85 = vld [vmem:[%s73 + $0x58] sm:$0xff]
    %v86 = vld [vmem:[%s73 + $0x60] sm:$0xff]
    %v87 = vld [vmem:[%s73 + $0x68] sm:$0xff]
    %v88 = vld [vmem:[%s73 + $0x70] sm:$0xff]
    %v89 = vld [vmem:[%s73 + $0x78] sm:$0xff]
    %s90 = scalar_lea.vmem %s2, 1
    %v91 = vld [vmem:[%s90] sm:$0x1]
    %v93 = vperm.slane %v91, 0
    %95 = vmatpush.msra.mxu0 %v89
    %96 = vmatpush.msra.mxu0 %v88
    %97 = vmatpush.msra.mxu0 %v87
    %98 = vmatpush.msra.mxu0 %v86
    %99 = vmatpush.msra.mxu0 %v85
    %100 = vmatpush.msra.mxu0 %v84
    %101 = vmatpush.msra.mxu0 %v83
    %102 = vmatpush.msra.mxu0 %v82
    %103 = vmatpush.msra.mxu0 %v81
    %104 = vmatpush.msra.mxu0 %v80
    %105 = vmatpush.msra.mxu0 %v79
    %106 = vmatpush.msra.mxu0 %v78
    %107 = vmatpush.msra.mxu0 %v77
    %108 = vmatpush.msra.mxu0 %v76
    %109 = vmatpush.msra.mxu0 %v75
    %110 = vmatpush.msra.mxu0 %v74
    %111 = vmatmul.f32.gmra.mxu0 %v72
    %v112 = vpop.f32.mrf.mxu0
    %v113 = vadd.f32 %v93, %v112
    %114 = vdwg.mxu0
    %v115 = vmax.f32 %v113, 0.0
    %s116 = scalar_lea.vmem [#allocation2], 256
    %v117 = vld [vmem:[%s116] sm:$0xff]
    %v118 = vld [vmem:[%s116 + $0x8] sm:$0xff]
    %v119 = vld [vmem:[%s116 + $0x10] sm:$0xff]
    %v120 = vld [vmem:[%s116 + $0x18] sm:$0xff]
    %v121 = vld [vmem:[%s116 + $0x20] sm:$0xff]
    %v122 = vld [vmem:[%s116 + $0x28] sm:$0xff]
    %v123 = vld [vmem:[%s116 + $0x30] sm:$0xff]
    %v124 = vld [vmem:[%s116 + $0x38] sm:$0xff]
    %v125 = vld [vmem:[%s116 + $0x40] sm:$0xff]
    %v126 = vld [vmem:[%s116 + $0x48] sm:$0xff]
    %v127 = vld [vmem:[%s116 + $0x50] sm:$0xff]
    %v128 = vld [vmem:[%s116 + $0x58] sm:$0xff]
    %v129 = vld [vmem:[%s116 + $0x60] sm:$0xff]
    %v130 = vld [vmem:[%s116 + $0x68] sm:$0xff]
    %v131 = vld [vmem:[%s116 + $0x70] sm:$0xff]
    %v132 = vld [vmem:[%s116 + $0x78] sm:$0xff]
    %s133 = scalar_lea.vmem %s2, 2
    %v134 = vld [vmem:[%s133] sm:$0x1]
    %v136 = vperm.slane %v134, 0
    %138 = vmatpush.msra.mxu0 %v132
    %139 = vmatpush.msra.mxu0 %v131
    %140 = vmatpush.msra.mxu0 %v130
    %141 = vmatpush.msra.mxu0 %v129
    %142 = vmatpush.msra.mxu0 %v128
    %143 = vmatpush.msra.mxu0 %v127
    %144 = vmatpush.msra.mxu0 %v126
    %145 = vmatpush.msra.mxu0 %v125
    %146 = vmatpush.msra.mxu0 %v124
    %147 = vmatpush.msra.mxu0 %v123
    %148 = vmatpush.msra.mxu0 %v122
    %149 = vmatpush.msra.mxu0 %v121
    %150 = vmatpush.msra.mxu0 %v120
    %151 = vmatpush.msra.mxu0 %v119
    %152 = vmatpush.msra.mxu0 %v118
    %153 = vmatpush.msra.mxu0 %v117
    %154 = vmatmul.f32.gmra.mxu0 %v115
    %v155 = vpop.f32.mrf.mxu0
    %v156 = vadd.f32 %v136, %v155
    %157 = vdwg.mxu0
    %v158 = vmax.f32 %v156, 0.0
    %159 = vmatpush.msra.mxu0 %v47
    %160 = vmatpush.msra.mxu0 %v46
    %161 = vmatpush.msra.mxu0 %v45
    %162 = vmatpush.msra.mxu0 %v44
    %163 = vmatpush.msra.mxu0 %v43
    %164 = vmatpush.msra.mxu0 %v42
    %165 = vmatpush.msra.mxu0 %v41
    %166 = vmatpush.msra.mxu0 %v40
    %167 = vmatpush.msra.mxu0 %v39
    %168 = vmatpush.msra.mxu0 %v38
    %169 = vmatpush.msra.mxu0 %v37
    %170 = vmatpush.msra.mxu0 %v36
    %171 = vmatpush.msra.mxu0 %v35
    %172 = vmatpush.msra.mxu0 %v34
    %173 = vmatpush.msra.mxu0 %v33
    %174 = vmatpush.msra.mxu0 %v32
    %175 = vmatmul.f32.gmra.mxu0 %v158
    %v176 = vpop.f32.mrf.mxu0
    %v177 = vadd.f32 %v50, %v176
    %178 = vdwg.mxu0
    %v179 = vxor.u32 %v177, 2147483648
    %v180 = vmul.f32 %v179, 1.442695
    %v181 = vpow.pop %v180
    %v182 = vadd.f32 %v181, 1.0
    %v183 = vrcp.pop %v182
    %v184 = vmul.f32 %v182, %v183
    %v185 = vsub.f32 1.0, %v184
    %v186 = vmul.f32 %v183, %v185
    %v187 = vadd.f32 %v183, %v186
    %vm188 = vweird.f32 %v182
    %vm189 = vweird.f32 %v183
    %vm190 = vmor %vm188, %vm189
    %v191 = vsel %vm190, %v183, %v187
    %v192 = vand.u32 2147483647, %v182
    %vm193 = vcmp.eq.f32.partialorder %v192, 8.507059e+37
    %v194 = vand.u32 %v182, 2147483648
    %v195 = vor.u32 1.1754944e-38, %v194
    %v196 = vsel %vm193, %v195, %v191
    %v197 = vmul.f32 1.0, %v196
    %s198 = scalar_lea.vmem [#allocation2], 384
    %v199 = vld [vmem:[%s198] sm:$0xff]
    %v200 = vld [vmem:[%s198 + $0x8] sm:$0xff]
    %v201 = vld [vmem:[%s198 + $0x10] sm:$0xff]
    %v202 = vld [vmem:[%s198 + $0x18] sm:$0xff]
    %v203 = vld [vmem:[%s198 + $0x20] sm:$0xff]
    %v204 = vld [vmem:[%s198 + $0x28] sm:$0xff]
    %v205 = vld [vmem:[%s198 + $0x30] sm:$0xff]
    %v206 = vld [vmem:[%s198 + $0x38] sm:$0xff]
    %v207 = vld [vmem:[%s198 + $0x40] sm:$0xff]
    %v208 = vld [vmem:[%s198 + $0x48] sm:$0xff]
    %v209 = vld [vmem:[%s198 + $0x50] sm:$0xff]
    %v210 = vld [vmem:[%s198 + $0x58] sm:$0xff]
    %v211 = vld [vmem:[%s198 + $0x60] sm:$0xff]
    %v212 = vld [vmem:[%s198 + $0x68] sm:$0xff]
    %v213 = vld [vmem:[%s198 + $0x70] sm:$0xff]
    %v214 = vld [vmem:[%s198 + $0x78] sm:$0xff]
    %s215 = scalar_lea.vmem %s2, 3
    %v216 = vld [vmem:[%s215] sm:$0x1]
    %v218 = vperm.slane %v216, 0
    %220 = vmatpush.msra.mxu0 %v214
    %221 = vmatpush.msra.mxu0 %v213
    %222 = vmatpush.msra.mxu0 %v212
    %223 = vmatpush.msra.mxu0 %v211
    %224 = vmatpush.msra.mxu0 %v210
    %225 = vmatpush.msra.mxu0 %v209
    %226 = vmatpush.msra.mxu0 %v208
    %227 = vmatpush.msra.mxu0 %v207
    %228 = vmatpush.msra.mxu0 %v206
    %229 = vmatpush.msra.mxu0 %v205
    %230 = vmatpush.msra.mxu0 %v204
    %231 = vmatpush.msra.mxu0 %v203
    %232 = vmatpush.msra.mxu0 %v202
    %233 = vmatpush.msra.mxu0 %v201
    %234 = vmatpush.msra.mxu0 %v200
    %235 = vmatpush.msra.mxu0 %v199
    %236 = vmatmul.f32.gmra.mxu0 %v197
    %v237 = vpop.f32.mrf.mxu0
    %v238 = vadd.f32 %v218, %v237
    %239 = vdwg.mxu0
    %240 = vst [vmem:[%s3] sm:$0xff] %v238
    %v241 = vld [vmem:[%s198] sm:$0xff]
    %v242 = vld [vmem:[%s198 + $0x8] sm:$0xff]
    %v243 = vld [vmem:[%s198 + $0x10] sm:$0xff]
    %v244 = vld [vmem:[%s198 + $0x18] sm:$0xff]
    %v245 = vld [vmem:[%s198 + $0x20] sm:$0xff]
    %v246 = vld [vmem:[%s198 + $0x28] sm:$0xff]
    %v247 = vld [vmem:[%s198 + $0x30] sm:$0xff]
    %v248 = vld [vmem:[%s198 + $0x38] sm:$0xff]
    %v249 = vld [vmem:[%s198 + $0x40] sm:$0xff]
    %v250 = vld [vmem:[%s198 + $0x48] sm:$0xff]
    %v251 = vld [vmem:[%s198 + $0x50] sm:$0xff]
    %v252 = vld [vmem:[%s198 + $0x58] sm:$0xff]
    %v253 = vld [vmem:[%s198 + $0x60] sm:$0xff]
    %v254 = vld [vmem:[%s198 + $0x68] sm:$0xff]
    %v255 = vld [vmem:[%s198 + $0x70] sm:$0xff]
    %v256 = vld [vmem:[%s198 + $0x78] sm:$0xff]
    %v257 = vld [vmem:[%s215] sm:$0x1]
    %v259 = vperm.slane %v257, 0
    %261 = vmatpush.msra.mxu0 %v256
    %262 = vmatpush.msra.mxu0 %v255
    %263 = vmatpush.msra.mxu0 %v254
    %264 = vmatpush.msra.mxu0 %v253
    %265 = vmatpush.msra.mxu0 %v252
    %266 = vmatpush.msra.mxu0 %v251
    %267 = vmatpush.msra.mxu0 %v250
    %268 = vmatpush.msra.mxu0 %v249
    %269 = vmatpush.msra.mxu0 %v248
    %270 = vmatpush.msra.mxu0 %v247
    %271 = vmatpush.msra.mxu0 %v246
    %272 = vmatpush.msra.mxu0 %v245
    %273 = vmatpush.msra.mxu0 %v244
    %274 = vmatpush.msra.mxu0 %v243
    %275 = vmatpush.msra.mxu0 %v242
    %276 = vmatpush.msra.mxu0 %v241
    %277 = vmatmul.f32.gmra.mxu0 %v31
    %v278 = vpop.f32.mrf.mxu0
    %v279 = vadd.f32 %v259, %v278
    %280 = vdwg.mxu0
    %281 = vst [vmem:[%s3 + $0x8] sm:$0xff] %v279
    // Predicated region
    $region18: #{siam_forward.1} parent=1 // pred_check
      _
    $region19: #{siam_forward.1} parent=1 // pred_check_branch
      %283 = sbr.rel (0) target = $region21
    $region20: #{siam_forward.1} parent=1 // pred_region
      _
    $region21: #{siam_forward.1} parent=1 // pred_fallthru
      _
    // Predicated region
    $region22: #{siam_forward.1} parent=1 // pred_check
      _
    $region23: #{siam_forward.1} parent=1 // pred_check_branch
      %285 = sbr.rel (0) target = $region25
    $region24: #{siam_forward.1} parent=1 // pred_region
      _
    $region25: #{siam_forward.1} parent=1 // pred_fallthru
      _
    %286 = vsyncpa [#allocation3], 1

</llo_original>
